<compile_context>
chip_gen: v5e
topology: v5e:2x2
jax: 0.10.0
libtpu: 0.0.40
codegen_flags: <defaults>
</compile_context>

<pallas_src>
import jax
import jax.numpy as jnp
from jax.experimental import pallas as pl
from jax.experimental.pallas import tpu as pltpu


def _round_up(a: int, b: int) -> int:
    return ((a + b - 1) // b) * b


def encoder_decoder_kernel(x_ref, w_enc_ref, b_enc_ref, w_dec_ref, b_dec_ref,
                           out_ref):
    """Fused forward for one batch tile: relu(relu(x @ We^T + be) @ Wd^T + bd).

    Weights arrive already cast to the compute dtype and pre-transposed to
    K-major layout (w_enc_ref: (n, m), w_dec_ref: (m, n)), so both matmuls are
    plain [M,K]x[K,N] on the MXU with f32 accumulation.  Biases are f32 and
    the bias+ReLU epilogue runs in f32 on the VPU.
    """
    # --- encode: Linear(n -> m) + ReLU --------------------------------------
    h = jnp.dot(x_ref[...], w_enc_ref[...], preferred_element_type=jnp.float32)
    h = jnp.maximum(h + b_enc_ref[...], 0.0)          # f32 epilogue (VPU)

    # --- decode: Linear(m -> n) + ReLU --------------------------------------
    h = h.astype(w_dec_ref.dtype)                     # narrow only matmul input
    y = jnp.dot(h, w_dec_ref[...], preferred_element_type=jnp.float32)
    y = jnp.maximum(y + b_dec_ref[...], 0.0)          # f32 epilogue
    out_ref[...] = y.astype(out_ref.dtype)


def encoder_decoder_forward(x, w_enc, b_enc, w_dec, b_dec,
                            *, compute_dtype=jnp.bfloat16):
    """x: (B, ...) flattened to (B, n).  PyTorch Linear weight convention:
    w_enc: (m, n), b_enc: (m,), w_dec: (n, m), b_dec: (n,).

    compute_dtype: dtype of the MXU matmul inputs.  Default bf16 (MXU-native
    throughput, f32 accumulation + f32 bias/ReLU epilogue).  Use jnp.float32
    as a verification path (close to, but not guaranteed bit-exact with, an
    f32 reference since MXU f32 is emulated via multi-pass bf16)."""
    B = x.shape[0]
    x2d = x.reshape(B, -1)                 # Flatten() equivalent (JAX glue)
    n = x2d.shape[1]
    m = w_enc.shape[0]
    assert w_enc.shape == (m, n) and b_enc.shape == (m,)
    assert w_dec.shape == (n, m) and b_dec.shape == (n,)
    out_dtype = x2d.dtype                  # keep module's output dtype

    # --- one-time (wrapper-side) weight prep: compute dtype + K-major layout.
    # In a real model, store the weights pre-cast/pre-transposed; doing it here
    # keeps every per-grid-step op (casts / transposes) out of the kernel.
    # TODO(synk): per-generation low-precision weights (int8 on v5e/v6e,
    # fp8 on v7x) would halve weight DMA again on the mem-bound path.
    w_enc_km = jnp.asarray(w_enc.T, dtype=compute_dtype)       # (n, m)
    w_dec_km = jnp.asarray(w_dec.T, dtype=compute_dtype)       # (m, n)
    b_enc_2d = b_enc.reshape(1, m).astype(jnp.float32)         # f32 epilogue
    b_dec_2d = b_dec.reshape(1, n).astype(jnp.float32)
    x2d = x2d.astype(compute_dtype)

    # --- lane padding: feature dims must be multiples of 128 for lane-dense
    # (unmasked) loads/stores.  Zero padding is transparent: padded hidden
    # units are relu(0)=0 and contribute nothing; padded outputs are sliced.
    n_pad = _round_up(n, 128)
    m_pad = _round_up(m, 128)
    if n_pad != n or m_pad != m:
        x2d = jnp.pad(x2d, ((0, 0), (0, n_pad - n)))
        w_enc_km = jnp.pad(w_enc_km, ((0, n_pad - n), (0, m_pad - m)))
        w_dec_km = jnp.pad(w_dec_km, ((0, m_pad - m), (0, n_pad - n)))
        b_enc_2d = jnp.pad(b_enc_2d, ((0, 0), (0, m_pad - m)))
        b_dec_2d = jnp.pad(b_dec_2d, ((0, 0), (0, n_pad - n)))

    # --- batch tiling: sublane multiple from the packed compute dtype, tile
    # capped at 512 rows, and >= 2 grid steps when possible so the "parallel"
    # batch axis shards across both TensorCores on v7x.
    sub = {4: 8, 2: 16, 1: 32}[jnp.dtype(compute_dtype).itemsize]
    TB_CAP = 512
    if B <= 2 * sub:
        TB = _round_up(B, sub)
    elif B <= 2 * TB_CAP:
        TB = _round_up(-(-B // 2), sub)          # grid_b >= 2
    else:
        TB = TB_CAP
    grid_b = pl.cdiv(B, TB)
    B_pad = grid_b * TB
    if B_pad != B:
        # TODO(synk): for very large ragged B, mask the final tile in-kernel
        # instead of materializing a padded copy of the activations.
        x2d = jnp.pad(x2d, ((0, B_pad - B), (0, 0)))

    # --- explicit VMEM budget: double-buffered x/out tiles + resident
    # (double-buffered) weights/biases + f32 intermediates, with 2x headroom.
    cd_isz = jnp.dtype(compute_dtype).itemsize
    out_isz = jnp.dtype(out_dtype).itemsize
    tile_bytes = TB * n_pad * (cd_isz + out_isz)
    resident_bytes = (w_enc_km.size + w_dec_km.size) * cd_isz + (m_pad + n_pad) * 4
    scratch_bytes = TB * (m_pad + n_pad) * 4
    vmem_limit = min(64 << 20,
                     max(32 << 20,
                         2 * (2 * tile_bytes + 2 * resident_bytes + scratch_bytes)))

    cost = pl.CostEstimate(
        flops=4 * B_pad * n_pad * m_pad,             # two matmuls
        transcendentals=0,
        bytes_accessed=(x2d.size * cd_isz
                        + (w_enc_km.size + w_dec_km.size) * cd_isz
                        + (b_enc_2d.size + b_dec_2d.size) * 4
                        + B_pad * n_pad * out_isz),
    )

    # TODO(synk): once pipeline_mode=pl.Buffered(1) is verified on the target
    # jax version, single-buffer the constant-index weight/bias specs to halve
    # their resident VMEM for large n/m (irrelevant at these shapes).
    out = pl.pallas_call(
        encoder_decoder_kernel,
        out_shape=jax.ShapeDtypeStruct((B_pad, n_pad), out_dtype),
        grid_spec=pltpu.PrefetchScalarGridSpec(
            num_scalar_prefetch=0,
            grid=(grid_b,),
            in_specs=[
                pl.BlockSpec((TB, n_pad), lambda i: (i, 0)),      # x (batch-tiled)
                pl.BlockSpec((n_pad, m_pad), lambda i: (0, 0)),   # W_enc^T (resident)
                pl.BlockSpec((1, m_pad), lambda i: (0, 0)),       # b_enc   (resident)
                pl.BlockSpec((m_pad, n_pad), lambda i: (0, 0)),   # W_dec^T (resident)
                pl.BlockSpec((1, n_pad), lambda i: (0, 0)),       # b_dec   (resident)
            ],
            out_specs=pl.BlockSpec((TB, n_pad), lambda i: (i, 0)),
        ),
        compiler_params=pltpu.CompilerParams(
            dimension_semantics=("parallel",),       # megacore on v7x
            vmem_limit_bytes=vmem_limit),
        cost_estimate=cost,
    )(x2d, w_enc_km, b_enc_2d, w_dec_km, b_dec_2d)

    if B_pad != B or n_pad != n:
        out = out[:B, :n]
    return out


def reference_forward(x, w_enc, b_enc, w_dec, b_dec):
    """Pure-JAX reference matching PyTorch semantics."""
    B = x.shape[0]
    x2d = x.reshape(B, -1)
    h = jax.nn.relu(x2d @ w_enc.T + b_enc)
    return jax.nn.relu(h @ w_dec.T + b_dec)


if __name__ == "__main__":
    # Shapes consistent with the module: config.input_shape = n = 256, m = n//2.
    B, n = 8, 256
    m = n // 2

    key = jax.random.PRNGKey(0)
    kx, kwe, kbe, kwd, kbd = jax.random.split(key, 5)

    x = jax.random.normal(kx, (B, n), dtype=jnp.float32)
    # Deterministic parameter init (uniform, PyTorch-Linear-like scale).
    w_enc = jax.random.uniform(kwe, (m, n), jnp.float32, -1.0, 1.0) / jnp.sqrt(n)
    b_enc = jax.random.uniform(kbe, (m,), jnp.float32, -1.0, 1.0) / jnp.sqrt(n)
    w_dec = jax.random.uniform(kwd, (n, m), jnp.float32, -1.0, 1.0) / jnp.sqrt(m)
    b_dec = jax.random.uniform(kbd, (n,), jnp.float32, -1.0, 1.0) / jnp.sqrt(m)

    ref = reference_forward(x, w_enc, b_enc, w_dec, b_dec)

    # Verification path: f32 matmul inputs (tight tolerance vs. f32 reference).
    out_f32 = jax.block_until_ready(
        encoder_decoder_forward(x, w_enc, b_enc, w_dec, b_dec,
                                compute_dtype=jnp.float32))
    assert out_f32.shape == (B, n), out_f32.shape
    assert jnp.allclose(out_f32, ref, atol=1e-5, rtol=1e-5), \
        float(jnp.max(jnp.abs(out_f32 - ref)))

    # Default path: bf16 matmul inputs, f32 accumulation + f32 bias/ReLU
    # epilogue (relaxed tolerance since matmul inputs lose mantissa bits).
    out_bf16 = jax.block_until_ready(
        encoder_decoder_forward(x, w_enc, b_enc, w_dec, b_dec))
    assert out_bf16.shape == (B, n), out_bf16.shape
    assert jnp.allclose(out_bf16, ref, atol=2e-2, rtol=2e-2), \
        float(jnp.max(jnp.abs(out_bf16 - ref)))

    print("KERNEL_OK")
</pallas_src>

<mosaic_0001>
module attributes {stable_mosaic.version = 11 : i64} {
  func.func @encoder_decoder_kernel(%arg0: i32, %arg1: memref<8x256xf32, #tpu.memory_space<vmem>>, %arg2: memref<256x128xf32, #tpu.memory_space<vmem>>, %arg3: memref<1x128xf32, #tpu.memory_space<vmem>>, %arg4: memref<128x256xf32, #tpu.memory_space<vmem>>, %arg5: memref<1x256xf32, #tpu.memory_space<vmem>>, %arg6: memref<8x256xf32, #tpu.memory_space<vmem>>) attributes {dimension_semantics = [#tpu.dimension_semantics<parallel>], iteration_bounds = array<i64: 1>, scalar_prefetch = 0 : i64, scratch_operands = 0 : i64, tpu.core_type = #tpu.core_type<tc>, window_params = [{transform_indices = @transform_0, window_bounds = array<i64: 8, 256>}, {pipeline_mode = #tpu.pipeline_mode<synchronous>, transform_indices = @transform_1, window_bounds = array<i64: 256, 128>}, {pipeline_mode = #tpu.pipeline_mode<synchronous>, transform_indices = @transform_2, window_bounds = array<i64: 1, 128>}, {pipeline_mode = #tpu.pipeline_mode<synchronous>, transform_indices = @transform_3, window_bounds = array<i64: 128, 256>}, {pipeline_mode = #tpu.pipeline_mode<synchronous>, transform_indices = @transform_4, window_bounds = array<i64: 1, 256>}, {transform_indices = @transform_5, window_bounds = array<i64: 8, 256>}]} {
    %c0 = arith.constant 0 : index
    %c0_0 = arith.constant 0 : index
    %0 = vector.load %arg1[%c0, %c0_0] : memref<8x256xf32, #tpu.memory_space<vmem>>, vector<8x256xf32>
    %c0_1 = arith.constant 0 : index
    %c0_2 = arith.constant 0 : index
    %1 = vector.load %arg2[%c0_1, %c0_2] : memref<256x128xf32, #tpu.memory_space<vmem>>, vector<256x128xf32>
    %cst = arith.constant dense<0.000000e+00> : vector<8x128xf32>
    %2 = tpu.matmul %0, %1, %cst {dimension_numbers = #tpu.dot_dimension_numbers<[1], [0], [0], [1], [0, 0, 1, 1], [], []>} : vector<8x256xf32>, vector<256x128xf32>, vector<8x128xf32> -> vector<8x128xf32>
    %c0_3 = arith.constant 0 : index
    %c0_4 = arith.constant 0 : index
    %3 = vector.load %arg3[%c0_3, %c0_4] : memref<1x128xf32, #tpu.memory_space<vmem>>, vector<1x128xf32>
    %4 = vector.broadcast %3 : vector<1x128xf32> to vector<8x128xf32>
    %5 = arith.addf %2, %4 : vector<8x128xf32>
    %cst_5 = arith.constant 0.000000e+00 : f32
    %6 = vector.broadcast %cst_5 : f32 to vector<8x128xf32>
    %7 = arith.maximumf %5, %6 : vector<8x128xf32>
    %c0_6 = arith.constant 0 : index
    %c0_7 = arith.constant 0 : index
    %8 = vector.load %arg4[%c0_6, %c0_7] : memref<128x256xf32, #tpu.memory_space<vmem>>, vector<128x256xf32>
    %cst_8 = arith.constant dense<0.000000e+00> : vector<8x256xf32>
    %9 = tpu.matmul %7, %8, %cst_8 {dimension_numbers = #tpu.dot_dimension_numbers<[1], [0], [0], [1], [0, 0, 1, 1], [], []>} : vector<8x128xf32>, vector<128x256xf32>, vector<8x256xf32> -> vector<8x256xf32>
    %c0_9 = arith.constant 0 : index
    %c0_10 = arith.constant 0 : index
    %10 = vector.load %arg5[%c0_9, %c0_10] : memref<1x256xf32, #tpu.memory_space<vmem>>, vector<1x256xf32>
    %11 = vector.broadcast %10 : vector<1x256xf32> to vector<8x256xf32>
    %12 = arith.addf %9, %11 : vector<8x256xf32>
    %cst_11 = arith.constant 0.000000e+00 : f32
    %13 = vector.broadcast %cst_11 : f32 to vector<8x256xf32>
    %14 = arith.maximumf %12, %13 : vector<8x256xf32>
    %c0_12 = arith.constant 0 : index
    %c0_13 = arith.constant 0 : index
    %15 = vector.load %arg6[%c0_12, %c0_13] : memref<8x256xf32, #tpu.memory_space<vmem>>, vector<8x256xf32>
    tpu.vector_store %arg6[%c0_12, %c0_13], %14 {strides = array<i32>} : memref<8x256xf32, #tpu.memory_space<vmem>>, vector<8x256xf32>,
    return
  }
  func.func @transform_0(%arg0: i32) -> (i32, i32) {
    %c0_i32 = arith.constant 0 : i32
    %c0_i32_0 = arith.constant 0 : i32
    return %arg0, %c0_i32 : i32, i32
  }
  func.func @transform_1(%arg0: i32) -> (i32, i32) {
    %c0_i32 = arith.constant 0 : i32
    %c0_i32_0 = arith.constant 0 : i32
    %c0_i32_1 = arith.constant 0 : i32
    return %c0_i32, %c0_i32_0 : i32, i32
  }
  func.func @transform_2(%arg0: i32) -> (i32, i32) {
    %c0_i32 = arith.constant 0 : i32
    %c0_i32_0 = arith.constant 0 : i32
    %c0_i32_1 = arith.constant 0 : i32
    return %c0_i32, %c0_i32_0 : i32, i32
  }
  func.func @transform_3(%arg0: i32) -> (i32, i32) {
    %c0_i32 = arith.constant 0 : i32
    %c0_i32_0 = arith.constant 0 : i32
    %c0_i32_1 = arith.constant 0 : i32
    return %c0_i32, %c0_i32_0 : i32, i32
  }
  func.func @transform_4(%arg0: i32) -> (i32, i32) {
    %c0_i32 = arith.constant 0 : i32
    %c0_i32_0 = arith.constant 0 : i32
    %c0_i32_1 = arith.constant 0 : i32
    return %c0_i32, %c0_i32_0 : i32, i32
  }
  func.func @transform_5(%arg0: i32) -> (i32, i32) {
    %c0_i32 = arith.constant 0 : i32
    %c0_i32_0 = arith.constant 0 : i32
    return %arg0, %c0_i32 : i32, i32
  }
}

</mosaic_0001>

<llo_original>
// kernel: tpu_custom_call.1
$region0: #{tpu_custom_call.1}
  #allocation0 [shape = 'u32[]', space=smem, size = 0x4, offset = 0x4, fixed_abs, tag = 'smem constant byte address 0x4 - core index']
  #allocation1 [shape = 'u32[72,128]{1,0:T(1,128)}', space=vmem, size = 0x9000, scoped, tag = 'internal scratch']
  %s0 = inlined_call_operand.hbm [shape: f32[8,256], index: 0, kind: input, shape index: {}]
  %s1 = inlined_call_operand.hbm [shape: f32[256,128], index: 1, kind: input, shape index: {}]
  %s2 = inlined_call_operand.vmem [shape: f32[1,128], index: 2, kind: input, shape index: {}]
  %s3 = inlined_call_operand.hbm [shape: f32[128,256], index: 3, kind: input, shape index: {}]
  %s4 = inlined_call_operand.vmem [shape: f32[1,256], index: 4, kind: input, shape index: {}]
  %s5 = inlined_call_operand.hbm [shape: f32[8,256], index: 5, kind: output, shape index: {}]
  %s6 = sld [smem:[#allocation0]]
  $region42: #{tpu_custom_call.1} parent=0
    _
  %s8 = ssub.s32 1, %s6
  %s9 = scalar_select 0, %s8, %s6
  $region1: #{tpu_custom_call.1} parent=0
    #allocation2 [shape = 'u8[8192]{0}', space=vmem, size = 0x2000, scoped, tag = 'input window, operand 0, single buffered']
    #allocation3 [shape = 's32[1]{0}', space=sflag, size = 0x4, scoped, tag = 'scoped memory for tpu_custom_call.1']
    #allocation4 [shape = 's32[1]{0}', space=sflag, size = 0x4, scoped, tag = 'scoped memory for tpu_custom_call.1']
    #allocation5 [shape = 'u8[131072]{0}', space=vmem, size = 0x20000, scoped, tag = 'input window, operand 1, single buffered']
    #allocation6 [shape = 's32[1]{0}', space=sflag, size = 0x4, scoped, tag = 'scoped memory for tpu_custom_call.1']
    #allocation7 [shape = 'u8[131072]{0}', space=vmem, size = 0x20000, scoped, tag = 'input window, operand 3, single buffered']
    #allocation8 [shape = 'u8[8192]{0}', space=vmem, size = 0x2000, scoped, tag = 'output window, operand 0, single buffered']
    %10 = vsyncpa [#allocation3], 0
    %11 = vsyncpa [#allocation6], 0
    %12 = vsyncpa [#allocation4], 0
    // Predicated region
    $region2: #{tpu_custom_call.1} parent=1 // pred_check
      _
    $region3: #{tpu_custom_call.1} parent=1 // pred_check_branch
      %14 = sbr.rel (0) target = $region5
    $region4: #{tpu_custom_call.1} parent=1 // pred_region
      %16 = vsyncadd [#allocation3], 0
      %s18 = sshll.u32 %s0, 4
      %s19 = int_to_ptr.hbm [resolvable:$true] %s18
      %s20 = sshll.u32 [#allocation2], 4
      %s21 = int_to_ptr.vmem [resolvable:$true] %s20
      %23 = dma.hbm_to_vmem [thread:$0]  %s19, 256, %s21, [#allocation3]
    $region5: #{tpu_custom_call.1} parent=1 // pred_fallthru
      _
    // Predicated region
    $region6: #{tpu_custom_call.1} parent=1 // pred_check
      _
    $region7: #{tpu_custom_call.1} parent=1 // pred_check_branch
      %25 = sbr.rel (0) target = $region9
    $region8: #{tpu_custom_call.1} parent=1 // pred_region
      %27 = vsyncadd [#allocation6], 0
      %s28 = sshll.u32 %s1, 4
      %s29 = int_to_ptr.hbm [resolvable:$true] %s28
      %s30 = sshll.u32 [#allocation5], 4
      %s31 = int_to_ptr.vmem [resolvable:$true] %s30
      %36 = dma.hbm_to_vmem [thread:$0]  %s29, 4096, %s31, [#allocation6], 128, 128, 8
    $region9: #{tpu_custom_call.1} parent=1 // pred_fallthru
      _
    // Predicated region
    $region10: #{tpu_custom_call.1} parent=1 // pred_check
      _
    $region11: #{tpu_custom_call.1} parent=1 // pred_check_branch
      %38 = sbr.rel (0) target = $region13
    $region12: #{tpu_custom_call.1} parent=1 // pred_region
      _
    $region13: #{tpu_custom_call.1} parent=1 // pred_fallthru
      _
    // Predicated region
    $region14: #{tpu_custom_call.1} parent=1 // pred_check
      _
    $region15: #{tpu_custom_call.1} parent=1 // pred_check_branch
      %40 = sbr.rel (0) target = $region17
    $region16: #{tpu_custom_call.1} parent=1 // pred_region
      %42 = vsyncadd [#allocation6], 0
      %s43 = sshll.u32 %s3, 4
      %s44 = int_to_ptr.hbm [resolvable:$true] %s43
      %s45 = sshll.u32 [#allocation7], 4
      %s46 = int_to_ptr.vmem [resolvable:$true] %s45
      %51 = dma.hbm_to_vmem [thread:$0]  %s44, 4096, %s46, [#allocation6], 256, 256, 16
    $region17: #{tpu_custom_call.1} parent=1 // pred_fallthru
      _
    // Predicated region
    $region18: #{tpu_custom_call.1} parent=1 // pred_check
      _
    $region19: #{tpu_custom_call.1} parent=1 // pred_check_branch
      %53 = sbr.rel (0) target = $region21
    $region20: #{tpu_custom_call.1} parent=1 // pred_region
      _
    $region21: #{tpu_custom_call.1} parent=1 // pred_fallthru
      _
    // Predicated region
    $region22: #{tpu_custom_call.1} parent=1 // pred_check
      _
    $region23: #{tpu_custom_call.1} parent=1 // pred_check_branch
      %55 = sbr.rel (0) target = $region25
    $region24: #{tpu_custom_call.1} parent=1 // pred_region
      %57 = dma.done [#allocation3], 256
    $region25: #{tpu_custom_call.1} parent=1 // pred_fallthru
      _
    // Predicated region
    $region26: #{tpu_custom_call.1} parent=1 // pred_check
      _
    $region27: #{tpu_custom_call.1} parent=1 // pred_check_branch
      %59 = sbr.rel (0) target = $region29
    $region28: #{tpu_custom_call.1} parent=1 // pred_region
      %61 = dma.done [#allocation6], 4096
    $region29: #{tpu_custom_call.1} parent=1 // pred_fallthru
      _
    // Predicated region
    $region30: #{tpu_custom_call.1} parent=1 // pred_check
      _
    $region31: #{tpu_custom_call.1} parent=1 // pred_check_branch
      %63 = sbr.rel (0) target = $region33
    $region32: #{tpu_custom_call.1} parent=1 // pred_region
      %65 = dma.done [#allocation6], 4096
    $region33: #{tpu_custom_call.1} parent=1 // pred_fallthru
      _
    %v66 = vld [vmem:[#allocation2] sm:$0xff]
    %v67 = vld [vmem:[#allocation2 + $0x8] sm:$0xff]
    %v68 = vld [vmem:[#allocation5] sm:$0xff]
    %v69 = vld [vmem:[#allocation5 + $0x8] sm:$0xff]
    %v70 = vld [vmem:[#allocation5 + $0x10] sm:$0xff]
    %v71 = vld [vmem:[#allocation5 + $0x18] sm:$0xff]
    %v72 = vld [vmem:[#allocation5 + $0x20] sm:$0xff]
    %v73 = vld [vmem:[#allocation5 + $0x28] sm:$0xff]
    %v74 = vld [vmem:[#allocation5 + $0x30] sm:$0xff]
    %v75 = vld [vmem:[#allocation5 + $0x38] sm:$0xff]
    %v76 = vld [vmem:[#allocation5 + $0x40] sm:$0xff]
    %v77 = vld [vmem:[#allocation5 + $0x48] sm:$0xff]
    %v78 = vld [vmem:[#allocation5 + $0x50] sm:$0xff]
    %v79 = vld [vmem:[#allocation5 + $0x58] sm:$0xff]
    %v80 = vld [vmem:[#allocation5 + $0x60] sm:$0xff]
    %v81 = vld [vmem:[#allocation5 + $0x68] sm:$0xff]
    %v82 = vld [vmem:[#allocation5 + $0x70] sm:$0xff]
    %v83 = vld [vmem:[#allocation5 + $0x78] sm:$0xff]
    %v84 = vld [vmem:[#allocation5 + $0x80] sm:$0xff]
    %v85 = vld [vmem:[#allocation5 + $0x88] sm:$0xff]
    %v86 = vld [vmem:[#allocation5 + $0x90] sm:$0xff]
    %v87 = vld [vmem:[#allocation5 + $0x98] sm:$0xff]
    %v88 = vld [vmem:[#allocation5 + $0xa0] sm:$0xff]
    %v89 = vld [vmem:[#allocation5 + $0xa8] sm:$0xff]
    %v90 = vld [vmem:[#allocation5 + $0xb0] sm:$0xff]
    %v91 = vld [vmem:[#allocation5 + $0xb8] sm:$0xff]
    %v92 = vld [vmem:[#allocation5 + $0xc0] sm:$0xff]
    %v93 = vld [vmem:[#allocation5 + $0xc8] sm:$0xff]
    %v94 = vld [vmem:[#allocation5 + $0xd0] sm:$0xff]
    %v95 = vld [vmem:[#allocation5 + $0xd8] sm:$0xff]
    %v96 = vld [vmem:[#allocation5 + $0xe0] sm:$0xff]
    %v97 = vld [vmem:[#allocation5 + $0xe8] sm:$0xff]
    %v98 = vld [vmem:[#allocation5 + $0xf0] sm:$0xff]
    %v99 = vld [vmem:[#allocation5 + $0xf8] sm:$0xff]
    %v100 = vld [vmem:[%s2] sm:$0x1]
    %v102 = vperm.slane %v100, 0
    %104 = vmatpush.msra.mxu0 %v83
    %105 = vmatpush.msra.mxu0 %v82
    %106 = vmatpush.msra.mxu0 %v81
    %107 = vmatpush.msra.mxu0 %v80
    %108 = vmatpush.msra.mxu0 %v79
    %109 = vmatpush.msra.mxu0 %v78
    %110 = vmatpush.msra.mxu0 %v77
    %111 = vmatpush.msra.mxu0 %v76
    %112 = vmatpush.msra.mxu0 %v75
    %113 = vmatpush.msra.mxu0 %v74
    %114 = vmatpush.msra.mxu0 %v73
    %115 = vmatpush.msra.mxu0 %v72
    %116 = vmatpush.msra.mxu0 %v71
    %117 = vmatpush.msra.mxu0 %v70
    %118 = vmatpush.msra.mxu0 %v69
    %119 = vmatpush.msra.mxu0 %v68
    %120 = vmatmul.f32.gmra.mxu0 %v66
    %v121 = vpop.f32.mrf.mxu0
    %v122 = vadd.f32 %v102, %v121
    %123 = vdwg.mxu0
    %124 = vmatpush.msra.mxu0 %v99
    %125 = vmatpush.msra.mxu0 %v98
    %126 = vmatpush.msra.mxu0 %v97
    %127 = vmatpush.msra.mxu0 %v96
    %128 = vmatpush.msra.mxu0 %v95
    %129 = vmatpush.msra.mxu0 %v94
    %130 = vmatpush.msra.mxu0 %v93
    %131 = vmatpush.msra.mxu0 %v92
    %132 = vmatpush.msra.mxu0 %v91
    %133 = vmatpush.msra.mxu0 %v90
    %134 = vmatpush.msra.mxu0 %v89
    %135 = vmatpush.msra.mxu0 %v88
    %136 = vmatpush.msra.mxu0 %v87
    %137 = vmatpush.msra.mxu0 %v86
    %138 = vmatpush.msra.mxu0 %v85
    %139 = vmatpush.msra.mxu0 %v84
    %140 = vmatmul.f32.gmra.mxu0 %v67
    %v141 = vpop.f32.mrf.mxu0
    %v142 = vadd.f32 %v122, %v141
    %143 = vdwg.mxu0
    %v144 = vmax.f32 %v142, 0.0
    %v145 = vld [vmem:[#allocation7] sm:$0xff]
    %v146 = vld [vmem:[#allocation7 + $0x8] sm:$0xff]
    %v147 = vld [vmem:[#allocation7 + $0x10] sm:$0xff]
    %v148 = vld [vmem:[#allocation7 + $0x18] sm:$0xff]
    %v149 = vld [vmem:[#allocation7 + $0x20] sm:$0xff]
    %v150 = vld [vmem:[#allocation7 + $0x28] sm:$0xff]
    %v151 = vld [vmem:[#allocation7 + $0x30] sm:$0xff]
    %v152 = vld [vmem:[#allocation7 + $0x38] sm:$0xff]
    %v153 = vld [vmem:[#allocation7 + $0x40] sm:$0xff]
    %v154 = vld [vmem:[#allocation7 + $0x48] sm:$0xff]
    %v155 = vld [vmem:[#allocation7 + $0x50] sm:$0xff]
    %v156 = vld [vmem:[#allocation7 + $0x58] sm:$0xff]
    %v157 = vld [vmem:[#allocation7 + $0x60] sm:$0xff]
    %v158 = vld [vmem:[#allocation7 + $0x68] sm:$0xff]
    %v159 = vld [vmem:[#allocation7 + $0x70] sm:$0xff]
    %v160 = vld [vmem:[#allocation7 + $0x78] sm:$0xff]
    %v161 = vld [vmem:[#allocation7 + $0x80] sm:$0xff]
    %v162 = vld [vmem:[#allocation7 + $0x88] sm:$0xff]
    %v163 = vld [vmem:[#allocation7 + $0x90] sm:$0xff]
    %v164 = vld [vmem:[#allocation7 + $0x98] sm:$0xff]
    %v165 = vld [vmem:[#allocation7 + $0xa0] sm:$0xff]
    %v166 = vld [vmem:[#allocation7 + $0xa8] sm:$0xff]
    %v167 = vld [vmem:[#allocation7 + $0xb0] sm:$0xff]
    %v168 = vld [vmem:[#allocation7 + $0xb8] sm:$0xff]
    %v169 = vld [vmem:[#allocation7 + $0xc0] sm:$0xff]
    %v170 = vld [vmem:[#allocation7 + $0xc8] sm:$0xff]
    %v171 = vld [vmem:[#allocation7 + $0xd0] sm:$0xff]
    %v172 = vld [vmem:[#allocation7 + $0xd8] sm:$0xff]
    %v173 = vld [vmem:[#allocation7 + $0xe0] sm:$0xff]
    %v174 = vld [vmem:[#allocation7 + $0xe8] sm:$0xff]
    %v175 = vld [vmem:[#allocation7 + $0xf0] sm:$0xff]
    %v176 = vld [vmem:[#allocation7 + $0xf8] sm:$0xff]
    %v177 = vld [vmem:[%s4] sm:$0x3]
    %v179 = vperm.slane %v177, 0
    %v180 = vperm.slane %v177, 1
    %183 = vmatpush.msra.mxu0 %v175
    %184 = vmatpush.msra.mxu0 %v173
    %185 = vmatpush.msra.mxu0 %v171
    %186 = vmatpush.msra.mxu0 %v169
    %187 = vmatpush.msra.mxu0 %v167
    %188 = vmatpush.msra.mxu0 %v165
    %189 = vmatpush.msra.mxu0 %v163
    %190 = vmatpush.msra.mxu0 %v161
    %191 = vmatpush.msra.mxu0 %v159
    %192 = vmatpush.msra.mxu0 %v157
    %193 = vmatpush.msra.mxu0 %v155
    %194 = vmatpush.msra.mxu0 %v153
    %195 = vmatpush.msra.mxu0 %v151
    %196 = vmatpush.msra.mxu0 %v149
    %197 = vmatpush.msra.mxu0 %v147
    %198 = vmatpush.msra.mxu0 %v145
    %199 = vmatmul.f32.gmra.mxu0 %v144
    %v200 = vpop.f32.mrf.mxu0
    %v201 = vadd.f32 %v179, %v200
    %202 = vdwg.mxu0
    %203 = vmatpush.msra.mxu0 %v176
    %204 = vmatpush.msra.mxu0 %v174
    %205 = vmatpush.msra.mxu0 %v172
    %206 = vmatpush.msra.mxu0 %v170
    %207 = vmatpush.msra.mxu0 %v168
    %208 = vmatpush.msra.mxu0 %v166
    %209 = vmatpush.msra.mxu0 %v164
    %210 = vmatpush.msra.mxu0 %v162
    %211 = vmatpush.msra.mxu0 %v160
    %212 = vmatpush.msra.mxu0 %v158
    %213 = vmatpush.msra.mxu0 %v156
    %214 = vmatpush.msra.mxu0 %v154
    %215 = vmatpush.msra.mxu0 %v152
    %216 = vmatpush.msra.mxu0 %v150
    %217 = vmatpush.msra.mxu0 %v148
    %218 = vmatpush.msra.mxu0 %v146
    %219 = vmatmul.f32.gmra.mxu0 %v144
    %v220 = vpop.f32.mrf.mxu0
    %v221 = vadd.f32 %v180, %v220
    %222 = vdwg.mxu0
    %v223 = vmax.f32 %v201, 0.0
    %v224 = vmax.f32 %v221, 0.0
    %225 = vst [vmem:[#allocation8] sm:$0xff] %v223
    %226 = vst [vmem:[#allocation8 + $0x8] sm:$0xff] %v224
    // Predicated region
    $region34: #{tpu_custom_call.1} parent=1 // pred_check
      _
    $region35: #{tpu_custom_call.1} parent=1 // pred_check_branch
      %228 = sbr.rel (0) target = $region37
    $region36: #{tpu_custom_call.1} parent=1 // pred_region
      %230 = vsyncadd [#allocation4], 0
      %s232 = sshll.u32 [#allocation8], 4
      %s233 = int_to_ptr.vmem [resolvable:$true] %s232
      %s234 = sshll.u32 %s5, 4
      %s235 = int_to_ptr.hbm [resolvable:$true] %s234
      %237 = dma.vmem_to_hbm [thread:$0]  %s233, 256, %s235, [#allocation4]
    $region37: #{tpu_custom_call.1} parent=1 // pred_fallthru
      _
    // Predicated region
    $region38: #{tpu_custom_call.1} parent=1 // pred_check
      _
    $region39: #{tpu_custom_call.1} parent=1 // pred_check_branch
      %239 = sbr.rel (0) target = $region41
    $region40: #{tpu_custom_call.1} parent=1 // pred_region
      %241 = dma.done [#allocation4], 256
    $region41: #{tpu_custom_call.1} parent=1 // pred_fallthru
      _
    %242 = vsyncpa [#allocation3], 1
    %243 = vsyncpa [#allocation6], 1
    %244 = vsyncpa [#allocation4], 1

</llo_original>
